<compile_context>
chip_gen: v7x
topology: tpu7x:2x2x1
jax: 0.10.0
libtpu: 0.0.40
codegen_flags: <defaults>
</compile_context>

<pallas_src>
import functools

import jax
import jax.numpy as jnp
from jax.experimental import pallas as pl
from jax.experimental.pallas import tpu as pltpu

_MiB = 1024 * 1024
_SMALL_FAST_PATH_BYTES = 512 * 1024      # below this, plain jnp is faster
_TARGET_TILE_BYTES = 4 * _MiB            # per-tile streaming granule
_LANE_CAP = 4096                         # max lane width per tile


def _round_down(v, m):
    return (v // m) * m


def _drop_path_kernel(x_ref, u_ref, o_ref, *, keep_prob):
    # u_ref: (tb, 1) uniform [0, 1) draws for the rows of this tile (float32).
    # Mask math in f32 regardless of x dtype (removes bf16 rounding bias);
    # the kernel is HBM-bound so the extra casts ride in VALU slack.
    u = u_ref[...].astype(jnp.float32)
    mask = jnp.floor(keep_prob + u)                 # 0.0 or 1.0 per row
    scale = mask * (1.0 / keep_prob)                # fold in 1/keep_prob
    x = x_ref[...].astype(jnp.float32)
    o_ref[...] = (x * scale).astype(o_ref.dtype)


def _drop_path_jnp(x, u, keep_prob):
    """Fused-by-XLA fast path for tiny inputs (same f32 mask math)."""
    bshape = (x.shape[0],) + (1,) * (x.ndim - 1)
    mask = jnp.floor(keep_prob + u.astype(jnp.float32)).reshape(bshape)
    scale = mask * (1.0 / keep_prob)
    return (x.astype(jnp.float32) * scale).astype(x.dtype)


def drop_path(x, drop_prob=0.0, training=False, *, key=None,
              force_pallas=False, donate_x=False):
    """Pallas implementation of DropPath.forward.

    x           : (B, ...) float array
    drop_prob   : python float, probability of dropping a whole sample
    training    : python bool
    key         : jax PRNG key (required when the stochastic path is taken)
    force_pallas: bypass the small-shape jnp fast path (testing / benchmarking)
    donate_x    : alias x's HBM buffer to the output (caller must not reuse x)
    """
    if drop_prob == 0.0 or not training:
        return x
    if key is None:
        raise ValueError("drop_path needs a PRNG key when training with drop_prob > 0")

    keep_prob = 1.0 - drop_prob
    B = x.shape[0]
    F = 1
    for d in x.shape[1:]:
        F *= d

    itemsize = jnp.dtype(x.dtype).itemsize
    total_bytes = B * F * itemsize

    # TODO(synk): per-sample torch.rand is sampled with jax.random in the
    # wrapper (B scalars, negligible work); only mask/scale/multiply run
    # in-kernel.  Uniforms are always f32 for unbiased mask math.
    u = jax.random.uniform(key, (B, 1), dtype=jnp.float32)

    # ---- small-shape fast path ----------------------------------------------
    if total_bytes < _SMALL_FAST_PATH_BYTES and not force_pallas:
        return _drop_path_jnp(x, u, keep_prob)

    x2d = x.reshape(B, F)

    # ---- tile selection ------------------------------------------------------
    # Sublane packing: 8 rows per vreg for 32-bit, 16 for bf16, 32 for 8-bit.
    sub_mult = max(8, 32 // itemsize)

    # Lane axis: multiple of 128 whenever F allows it; ragged tail handled by
    # pl.cdiv + a partial (masked-store) final block.  tf = F only when F < 128.
    if F < 128:
        tf = F
    else:
        tf = min(_round_down(F, 128), _LANE_CAP)

    # Sublane axis: fill the ~4 MiB tile budget with whole packed-row groups.
    rows = max(1, _TARGET_TILE_BYTES // max(1, tf * itemsize))
    if rows >= B:
        tb = B                                   # full dim — always legal
    else:
        tb = max(sub_mult, _round_down(rows, sub_mult))

    gb, gf = pl.cdiv(B, tb), pl.cdiv(F, tf)

    # If the grid collapsed to a single step but the tensor is large, split so
    # v7x's second TensorCore has work (no-op on single-core v5e/v6e).  Tiny
    # inputs never reach here (fast path) so we don't split pure overhead.
    if gb * gf == 1 and total_bytes >= 2 * _MiB:
        if tf % 256 == 0:
            tf //= 2
            gf = pl.cdiv(F, tf)
        elif tb >= 2 * sub_mult:
            tb = max(sub_mult, _round_down(tb // 2, sub_mult))
            gb = pl.cdiv(B, tb)
    grid = (gb, gf)

    tile_bytes = tb * tf * itemsize
    # Double-buffered in + out ~= 4x tile_bytes (+ tiny u tiles).  Raise the
    # scoped VMEM limit explicitly (v5e default is 16 MiB) but stay well under
    # v7x's 64 MiB physical VMEM.
    try:
        vmem_cap = int(pltpu.get_tpu_info().vmem_capacity_bytes)
    except Exception:
        vmem_cap = 64 * _MiB                     # conservative (v7x per-core)
    vmem_limit = int(min(max(32 * _MiB, 6 * tile_bytes), (3 * vmem_cap) // 4,
                         48 * _MiB))

    kernel = functools.partial(_drop_path_kernel, keep_prob=keep_prob)

    out2d = pl.pallas_call(
        kernel,
        out_shape=jax.ShapeDtypeStruct((B, F), x2d.dtype),
        grid_spec=pltpu.PrefetchScalarGridSpec(
            num_scalar_prefetch=0,
            grid=grid,
            in_specs=[
                pl.BlockSpec((tb, tf), lambda i, j: (i, j)),  # x tile
                pl.BlockSpec((tb, 1), lambda i, j: (i, 0)),   # per-row uniforms
            ],
            out_specs=pl.BlockSpec((tb, tf), lambda i, j: (i, j)),
        ),
        compiler_params=pltpu.CompilerParams(
            dimension_semantics=("parallel", "parallel"),
            vmem_limit_bytes=vmem_limit),
        cost_estimate=pl.CostEstimate(
            flops=2 * B * F,
            bytes_accessed=2 * B * F * itemsize + B * 4,
            transcendentals=0),
        input_output_aliases=({0: 0} if donate_x else {}),
    )(x2d, u)

    return out2d.reshape(x.shape)


def _reference(x, u, drop_prob):
    keep_prob = 1.0 - drop_prob
    shape = (x.shape[0],) + (1,) * (x.ndim - 1)
    mask = jnp.floor(keep_prob + u.reshape(shape))
    return (x / keep_prob) * mask


if __name__ == "__main__":
    root = jax.random.PRNGKey(0)
    k1, k2, k3, k4 = jax.random.split(root, 4)
    drop_prob = 0.25

    # --- 1. Tiny ViT-block shape through the default (jnp fast) path --------
    B, S, D = 2, 16, 64
    x_small = jax.random.normal(k1, (B, S, D), dtype=jnp.float32)
    out_fast = jax.block_until_ready(
        drop_path(x_small, drop_prob, training=True, key=k2))
    u_small = jax.random.uniform(k2, (B, 1), dtype=jnp.float32)
    ref_small = _reference(x_small, u_small, drop_prob)
    assert out_fast.shape == x_small.shape
    assert jnp.allclose(out_fast, ref_small, atol=1e-5, rtol=1e-5)

    # --- 2. Same shape forced through the Pallas kernel ---------------------
    out_pl = jax.block_until_ready(
        drop_path(x_small, drop_prob, training=True, key=k2, force_pallas=True))
    assert jnp.allclose(out_pl, ref_small, atol=1e-5, rtol=1e-5)

    # --- 3. F not a multiple of 128 (ragged lane tail in the kernel) --------
    B2, S2, D2 = 4, 9, 40      # F = 360 -> tf = 256, partial final lane block
    x_r = jax.random.normal(k3, (B2, S2, D2), dtype=jnp.float32)
    out_r = jax.block_until_ready(
        drop_path(x_r, drop_prob, training=True, key=k4, force_pallas=True))
    u_r = jax.random.uniform(k4, (B2, 1), dtype=jnp.float32)
    ref_r = _reference(x_r, u_r, drop_prob)
    assert jnp.allclose(out_r, ref_r, atol=1e-5, rtol=1e-5)

    # --- 4. bf16 input (f32 mask math in-kernel) -----------------------------
    x_bf = x_small.astype(jnp.bfloat16)
    out_bf = jax.block_until_ready(
        drop_path(x_bf, drop_prob, training=True, key=k2, force_pallas=True))
    ref_bf = _reference(x_bf.astype(jnp.float32), u_small,
                        drop_prob).astype(jnp.bfloat16)
    assert jnp.allclose(out_bf.astype(jnp.float32), ref_bf.astype(jnp.float32),
                        atol=1e-2, rtol=1e-2)

    # --- 5. Identity paths ----------------------------------------------------
    assert jnp.array_equal(drop_path(x_small, drop_prob, training=False), x_small)
    assert jnp.array_equal(drop_path(x_small, 0.0, training=True, key=k2), x_small)

    print("KERNEL_OK")
</pallas_src>

<mosaic_0001>
module attributes {stable_mosaic.version = 11 : i64} {
  func.func @_drop_path_kernel(%arg0: i32, %arg1: i32, %arg2: memref<2x1024xf32, #tpu.memory_space<vmem>>, %arg3: memref<2x1xf32, #tpu.memory_space<vmem>>, %arg4: memref<2x1024xf32, #tpu.memory_space<vmem>>) attributes {dimension_semantics = [#tpu.dimension_semantics<parallel>, #tpu.dimension_semantics<parallel>], iteration_bounds = array<i64: 1, 1>, scalar_prefetch = 0 : i64, scratch_operands = 0 : i64, tpu.core_type = #tpu.core_type<tc>, window_params = [{transform_indices = @transform_0, window_bounds = array<i64: 2, 1024>}, {transform_indices = @transform_1, window_bounds = array<i64: 2, 1>}, {transform_indices = @transform_2, window_bounds = array<i64: 2, 1024>}]} {
    %c0 = arith.constant 0 : index
    %c0_0 = arith.constant 0 : index
    %0 = vector.load %arg3[%c0, %c0_0] : memref<2x1xf32, #tpu.memory_space<vmem>>, vector<2x1xf32>
    %cst = arith.constant 7.500000e-01 : f32
    %1 = vector.broadcast %cst : f32 to vector<2x1xf32>
    %2 = arith.addf %1, %0 : vector<2x1xf32>
    %3 = math.floor %2 : vector<2x1xf32>
    %cst_1 = arith.constant 1.33333337 : f32
    %4 = vector.broadcast %cst_1 : f32 to vector<2x1xf32>
    %5 = arith.mulf %3, %4 : vector<2x1xf32>
    %c0_2 = arith.constant 0 : index
    %c0_3 = arith.constant 0 : index
    %6 = vector.load %arg2[%c0_2, %c0_3] : memref<2x1024xf32, #tpu.memory_space<vmem>>, vector<2x1024xf32>
    %7 = vector.broadcast %5 : vector<2x1xf32> to vector<2x1024xf32>
    %8 = arith.mulf %6, %7 : vector<2x1024xf32>
    %c0_4 = arith.constant 0 : index
    %c0_5 = arith.constant 0 : index
    %9 = vector.load %arg4[%c0_4, %c0_5] : memref<2x1024xf32, #tpu.memory_space<vmem>>, vector<2x1024xf32>
    tpu.vector_store %arg4[%c0_4, %c0_5], %8 {strides = array<i32>} : memref<2x1024xf32, #tpu.memory_space<vmem>>, vector<2x1024xf32>,
    return
  }
  func.func @transform_0(%arg0: i32, %arg1: i32) -> (i32, i32) {
    %c0_i32 = arith.constant 0 : i32
    return %arg0, %arg1 : i32, i32
  }
  func.func @transform_1(%arg0: i32, %arg1: i32) -> (i32, i32) {
    %c0_i32 = arith.constant 0 : i32
    %c0_i32_0 = arith.constant 0 : i32
    return %arg0, %c0_i32 : i32, i32
  }
  func.func @transform_2(%arg0: i32, %arg1: i32) -> (i32, i32) {
    %c0_i32 = arith.constant 0 : i32
    return %arg0, %arg1 : i32, i32
  }
}

</mosaic_0001>

<llo_original>
// kernel: tpu_custom_call.1
$region0: #{tpu_custom_call.1}
  #allocation0 [shape = 'u32[]', space=smem, size = 0x4, offset = 0x4, fixed_abs, tag = 'smem constant byte address 0x4 - core index']
  #allocation1 [shape = 'u32[144,128]{1,0:T(1,128)}', space=vmem, size = 0x12000, scoped, tag = 'internal scratch']
  %s0 = inlined_call_operand.hbm [shape: f32[2,1024], index: 0, kind: input, shape index: {}]
  %s1 = inlined_call_operand.vmem [shape: f32[2,1], index: 1, kind: input, shape index: {}]
  %s2 = inlined_call_operand.hbm [shape: f32[2,1024], index: 2, kind: output, shape index: {}]
  %s3 = sld [smem:[#allocation0]]
  $region22: #{tpu_custom_call.1} parent=0
    _
  %s5 = ssub.s32 1, %s3
  %s6 = scalar_select 0, %s5, %s3
  $region1: #{tpu_custom_call.1} parent=0
    #allocation2 [shape = 'u8[8192]{0}', space=vmem, size = 0x2000, scoped, tag = 'input window, operand 0, single buffered']
    #allocation3 [shape = 's32[1]{0}', space=sflag, size = 0x4, scoped, tag = 'scoped memory for tpu_custom_call.1']
    #allocation4 [shape = 's32[1]{0}', space=sflag, size = 0x4, scoped, tag = 'scoped memory for tpu_custom_call.1']
    #allocation5 [shape = 'u8[8192]{0}', space=vmem, size = 0x2000, scoped, tag = 'output window, operand 0, single buffered']
    %7 = vsyncpa [#allocation3], 0
    %8 = vsyncpa [#allocation4], 0
    // Predicated region
    $region2: #{tpu_custom_call.1} parent=1 // pred_check
      _
    $region3: #{tpu_custom_call.1} parent=1 // pred_check_branch
      %10 = sbr.rel (0) target = $region5
    $region4: #{tpu_custom_call.1} parent=1 // pred_region
      %s12 = ssub.s32 256, 256
      %13 = vsyncadd [#allocation3], %s12
      %s15 = sshll.u32 [#allocation2], 4
      %s16 = int_to_ptr.vmem [resolvable:$true] %s15
      %18 = dma.hbm_to_vmem [thread:$0]  %s0, 256, %s16, [#allocation3]
    $region5: #{tpu_custom_call.1} parent=1 // pred_fallthru
      _
    // Predicated region
    $region6: #{tpu_custom_call.1} parent=1 // pred_check
      _
    $region7: #{tpu_custom_call.1} parent=1 // pred_check_branch
      %20 = sbr.rel (0) target = $region9
    $region8: #{tpu_custom_call.1} parent=1 // pred_region
      _
    $region9: #{tpu_custom_call.1} parent=1 // pred_fallthru
      _
    // Predicated region
    $region10: #{tpu_custom_call.1} parent=1 // pred_check
      _
    $region11: #{tpu_custom_call.1} parent=1 // pred_check_branch
      %22 = sbr.rel (0) target = $region13
    $region12: #{tpu_custom_call.1} parent=1 // pred_region
      %23 = dma.done [#allocation3], 256
    $region13: #{tpu_custom_call.1} parent=1 // pred_fallthru
      _
    %v24 = vld [vmem:[%s1] sm:$0x3]
    %v25 = vadd.f32 %v24, 0.75
    %v26 = vfloor.f32 %v25
    %v27 = vmul.f32 %v26, 1.3333334
    %v28 = vld [vmem:[#allocation2] sm:$0xff]
    %v29 = vld [vmem:[#allocation2 + $0x8] sm:$0xff]
    %31 = vset.pattern.permute.xlu0 0
    %32 = vperm.xlu0 %31, %v27
    %v33 = vpop.permute.xlu0 %32
    %v35 = vunpack.c.l.s4 269488144
    %v36 = vunpack.c.0.s8 %v35
    %v37 = vlaneseq
    %v38 = vshrl.u32 %v37, 7
    %v39 = vsub.s32 %v36, %v38
    %v40 = vrot.slane %v33, %v39
    %v42 = vmul.f32 %v28, %v40
    %v43 = vmul.f32 %v29, %v40
    %44 = vst [vmem:[#allocation5] sm:$0xff] %v42
    %45 = vst [vmem:[#allocation5 + $0x8] sm:$0xff] %v43
    // Predicated region
    $region14: #{tpu_custom_call.1} parent=1 // pred_check
      _
    $region15: #{tpu_custom_call.1} parent=1 // pred_check_branch
      %47 = sbr.rel (0) target = $region17
    $region16: #{tpu_custom_call.1} parent=1 // pred_region
      %s49 = ssub.s32 256, 256
      %50 = vsyncadd [#allocation4], %s49
      %s52 = sshll.u32 [#allocation5], 4
      %s53 = int_to_ptr.vmem [resolvable:$true] %s52
      %55 = dma.vmem_to_hbm [thread:$0]  %s53, 256, %s2, [#allocation4]
    $region17: #{tpu_custom_call.1} parent=1 // pred_fallthru
      _
    // Predicated region
    $region18: #{tpu_custom_call.1} parent=1 // pred_check
      _
    $region19: #{tpu_custom_call.1} parent=1 // pred_check_branch
      %57 = sbr.rel (0) target = $region21
    $region20: #{tpu_custom_call.1} parent=1 // pred_region
      %58 = dma.done [#allocation4], 256
    $region21: #{tpu_custom_call.1} parent=1 // pred_fallthru
      _
    %59 = vsyncpa [#allocation3], 1
    %60 = vsyncpa [#allocation4], 1

</llo_original>
